<compile_context>
chip_gen: v7x
topology: tpu7x:2x2x1
jax: 0.10.0
libtpu: 0.0.40
codegen_flags: <defaults>
</compile_context>

<pallas_src>
import jax
import jax.numpy as jnp
from jax.experimental import pallas as pl
from jax.experimental.pallas import tpu as pltpu

INPUT_SIZE = 4
HIDDEN1_SIZE = 16
OUTPUT_SIZE = 3


def _round_up(n, m):
    return ((n + m - 1) // m) * m


def _net_kernel(x_ref, w1_ref, b1_ref, w2_ref, b2_ref, out_ref):
    # x_ref:  (4,  TB)   batch on lanes
    # w1_ref: (16, 4)    b1_ref: (16, 1)
    # w2_ref: (3,  16)   b2_ref: (3,  1)
    # out_ref:(3,  TB)
    xT = x_ref[...]
    w1 = w1_ref[...]
    b1 = b1_ref[...]
    w2 = w2_ref[...]
    b2 = b2_ref[...]

    # fc1 on the MXU: (16,4) @ (4,TB) -> (16,TB).
    # HIGHEST precision keeps f32 accuracy (default bf16 passes would not
    # meet the 1e-5 tolerance). Bias folded in once after the dot.
    h = jnp.dot(w1, xT,
                preferred_element_type=jnp.float32,
                precision=jax.lax.Precision.HIGHEST)
    h = jax.nn.sigmoid(h + b1)                          # (16, TB), sigmoid -> EUP

    # fc3 on the MXU: (3,16) @ (16,TB) -> (3,TB).
    z = jnp.dot(w2, h,
                preferred_element_type=jnp.float32,
                precision=jax.lax.Precision.HIGHEST) + b2

    # log_softmax over the 3 class rows (sublane axis), numerically stable.
    z_max = jnp.max(z, axis=0, keepdims=True)           # (1, TB)
    z_shift = z - z_max
    lse = jnp.log(jnp.sum(jnp.exp(z_shift), axis=0, keepdims=True))
    out_ref[...] = z_shift - lse


def net_forward_fb(xT, w1, b1, w2, b2, *, tb=None):
    """Preferred lane-dense entry point.

    xT: (4, B) f32 (features, batch) -> (3, B) f32 log-probabilities.
    w1: (16, 4), b1: (16, 1), w2: (3, 16), b2: (3, 1) (PyTorch layout).
    """
    B = xT.shape[1]

    if tb is None:
        # ~16 MiB of VMEM-resident state at 64K samples: safe on v7x (64 MiB
        # VMEM, 32 MiB scoped default). On v6e/v5e raise to 131072-262144.
        tb = 65536
    # Multiple of 128 (lane width), no larger than the 128-padded batch.
    tb = max(128, _round_up(min(tb, _round_up(B, 128)), 128))
    n_tiles = pl.cdiv(B, tb)

    # VMEM budget: double-buffered (4,tb)+(3,tb) I/O plus elementwise
    # temporaries (h, z, exp, ...) -- ~256 B/sample, plus headroom.
    vmem_limit_bytes = max(8 * 1024 * 1024, 256 * tb + (2 << 20))

    param_bytes = 4 * (
        INPUT_SIZE * HIDDEN1_SIZE + HIDDEN1_SIZE
        + HIDDEN1_SIZE * OUTPUT_SIZE + OUTPUT_SIZE
    )
    cost = pl.CostEstimate(
        flops=2 * B * (INPUT_SIZE * HIDDEN1_SIZE + HIDDEN1_SIZE * OUTPUT_SIZE),
        transcendentals=B * (HIDDEN1_SIZE + OUTPUT_SIZE + 1),  # sigmoid + exp + log
        bytes_accessed=B * 4 * (INPUT_SIZE + OUTPUT_SIZE) + param_bytes,
    )

    const_spec = lambda shape: pl.BlockSpec(shape, lambda i: (0, 0))

    out = pl.pallas_call(
        _net_kernel,
        out_shape=jax.ShapeDtypeStruct((OUTPUT_SIZE, B), jnp.float32),
        grid=(n_tiles,),
        in_specs=[
            pl.BlockSpec((INPUT_SIZE, tb), lambda i: (0, i)),   # x tile, streamed
            const_spec((HIDDEN1_SIZE, INPUT_SIZE)),             # w1, VMEM-resident
            const_spec((HIDDEN1_SIZE, 1)),                      # b1
            const_spec((OUTPUT_SIZE, HIDDEN1_SIZE)),            # w2
            const_spec((OUTPUT_SIZE, 1)),                       # b2
        ],
        out_specs=pl.BlockSpec((OUTPUT_SIZE, tb), lambda i: (0, i)),
        compiler_params=pltpu.CompilerParams(
            dimension_semantics=("parallel",),
            vmem_limit_bytes=vmem_limit_bytes,
        ),
        cost_estimate=cost,
    )(xT, w1, b1, w2, b2)

    return out                                          # (3, B)


def net_forward(x, w1, b1, w2, b2, *, tb=None):
    """PyTorch-compatible interface: x (B, 4) -> (B, 3) log-probabilities.

    Note: the transposes here are layout plumbing for API compatibility only;
    in a real pipeline keep activations in (features, batch) layout and call
    net_forward_fb directly to avoid the extra HBM round trips.
    """
    xT = jnp.transpose(x)                               # (4, B)
    outT = net_forward_fb(xT, w1, b1, w2, b2, tb=tb)    # (3, B)
    return jnp.transpose(outT)                          # (B, 3)


def init_params(key):
    """PyTorch nn.Linear default init: U[-1/sqrt(fan_in), 1/sqrt(fan_in)].
    Weights stored in PyTorch (out, in) layout; biases as column vectors."""
    k1, k2, k3, k4 = jax.random.split(key, 4)
    bound1 = 1.0 / jnp.sqrt(float(INPUT_SIZE))
    bound2 = 1.0 / jnp.sqrt(float(HIDDEN1_SIZE))
    w1 = jax.random.uniform(k1, (HIDDEN1_SIZE, INPUT_SIZE), jnp.float32, -bound1, bound1)
    b1 = jax.random.uniform(k2, (HIDDEN1_SIZE, 1), jnp.float32, -bound1, bound1)
    w2 = jax.random.uniform(k3, (OUTPUT_SIZE, HIDDEN1_SIZE), jnp.float32, -bound2, bound2)
    b2 = jax.random.uniform(k4, (OUTPUT_SIZE, 1), jnp.float32, -bound2, bound2)
    return w1, b1, w2, b2


def reference_forward(x, w1, b1, w2, b2):
    # Highest precision so the reference itself is true f32 (XLA's default
    # TPU matmul would otherwise use bf16 passes and blur the comparison).
    hp = jax.lax.Precision.HIGHEST
    h = jax.nn.sigmoid(jnp.dot(x, w1.T, precision=hp) + b1[:, 0])
    z = jnp.dot(h, w2.T, precision=hp) + b2[:, 0]
    return jax.nn.log_softmax(z, axis=-1)


if __name__ == "__main__":
    key = jax.random.PRNGKey(0)
    kx, kp = jax.random.split(key)

    # Small batch, intentionally NOT a multiple of 128 so the partial trailing
    # block (masked writeback, no jnp.pad) and a multi-step grid are both
    # exercised (tb=128 -> grid=(2,), second block partial).
    B = 200
    x = jax.random.normal(kx, (B, INPUT_SIZE), dtype=jnp.float32)
    w1, b1, w2, b2 = init_params(kp)
    ref = reference_forward(x, w1, b1, w2, b2)

    # 1) PyTorch-style wrapper, small tile (exercises multi-step grid + mask).
    out = net_forward(x, w1, b1, w2, b2, tb=128)
    out = jax.block_until_ready(out)
    assert out.shape == (B, OUTPUT_SIZE)
    assert jnp.allclose(out, ref, atol=1e-5, rtol=1e-5), "mismatch vs JAX reference"
    assert jnp.allclose(jnp.sum(jnp.exp(out), axis=-1), 1.0, atol=1e-5)

    # 2) Preferred lane-dense entry point with default (large, auto-clamped)
    #    tile: no wrapper relayout at all.
    outT = net_forward_fb(jnp.transpose(x), w1, b1, w2, b2)
    outT = jax.block_until_ready(outT)
    assert outT.shape == (OUTPUT_SIZE, B)
    assert jnp.allclose(outT.T, ref, atol=1e-5, rtol=1e-5), "mismatch (fb path)"

    print("KERNEL_OK")
</pallas_src>

<mosaic_0001>
module attributes {stable_mosaic.version = 11 : i64} {
  func.func @_net_kernel(%arg0: i32, %arg1: memref<4x128xf32, #tpu.memory_space<vmem>>, %arg2: memref<16x4xf32, #tpu.memory_space<vmem>>, %arg3: memref<16x1xf32, #tpu.memory_space<vmem>>, %arg4: memref<3x16xf32, #tpu.memory_space<vmem>>, %arg5: memref<3x1xf32, #tpu.memory_space<vmem>>, %arg6: memref<3x128xf32, #tpu.memory_space<vmem>>) attributes {dimension_semantics = [#tpu.dimension_semantics<parallel>], iteration_bounds = array<i64: 2>, scalar_prefetch = 0 : i64, scratch_operands = 0 : i64, tpu.core_type = #tpu.core_type<tc>, window_params = [{transform_indices = @transform_0, window_bounds = array<i64: 4, 128>}, {pipeline_mode = #tpu.pipeline_mode<synchronous>, transform_indices = @transform_1, window_bounds = array<i64: 16, 4>}, {pipeline_mode = #tpu.pipeline_mode<synchronous>, transform_indices = @transform_2, window_bounds = array<i64: 16, 1>}, {pipeline_mode = #tpu.pipeline_mode<synchronous>, transform_indices = @transform_3, window_bounds = array<i64: 3, 16>}, {pipeline_mode = #tpu.pipeline_mode<synchronous>, transform_indices = @transform_4, window_bounds = array<i64: 3, 1>}, {transform_indices = @transform_5, window_bounds = array<i64: 3, 128>}]} {
    %c0 = arith.constant 0 : index
    %c0_0 = arith.constant 0 : index
    %0 = vector.load %arg1[%c0, %c0_0] : memref<4x128xf32, #tpu.memory_space<vmem>>, vector<4x128xf32>
    %c0_1 = arith.constant 0 : index
    %c0_2 = arith.constant 0 : index
    %1 = vector.load %arg2[%c0_1, %c0_2] : memref<16x4xf32, #tpu.memory_space<vmem>>, vector<16x4xf32>
    %c0_3 = arith.constant 0 : index
    %c0_4 = arith.constant 0 : index
    %2 = vector.load %arg3[%c0_3, %c0_4] : memref<16x1xf32, #tpu.memory_space<vmem>>, vector<16x1xf32>
    %c0_5 = arith.constant 0 : index
    %c0_6 = arith.constant 0 : index
    %3 = vector.load %arg4[%c0_5, %c0_6] : memref<3x16xf32, #tpu.memory_space<vmem>>, vector<3x16xf32>
    %c0_7 = arith.constant 0 : index
    %c0_8 = arith.constant 0 : index
    %4 = vector.load %arg5[%c0_7, %c0_8] : memref<3x1xf32, #tpu.memory_space<vmem>>, vector<3x1xf32>
    %cst = arith.constant dense<0.000000e+00> : vector<16x128xf32>
    %5 = tpu.matmul %1, %0, %cst {dimension_numbers = #tpu.dot_dimension_numbers<[1], [0], [0], [1], [0, 0, 1, 1], [], []>, precision = #tpu.contract_precision<fp32>} : vector<16x4xf32>, vector<4x128xf32>, vector<16x128xf32> -> vector<16x128xf32>
    %6 = vector.broadcast %2 : vector<16x1xf32> to vector<16x128xf32>
    %7 = arith.addf %5, %6 : vector<16x128xf32>
    %8 = arith.negf %7 : vector<16x128xf32>
    %9 = math.exp %8 : vector<16x128xf32>
    %cst_9 = arith.constant 1.000000e+00 : f32
    %10 = vector.broadcast %cst_9 : f32 to vector<16x128xf32>
    %11 = arith.addf %10, %9 : vector<16x128xf32>
    %12 = arith.divf %10, %11 : vector<16x128xf32>
    %cst_10 = arith.constant dense<0.000000e+00> : vector<3x128xf32>
    %13 = tpu.matmul %3, %12, %cst_10 {dimension_numbers = #tpu.dot_dimension_numbers<[1], [0], [0], [1], [0, 0, 1, 1], [], []>, precision = #tpu.contract_precision<fp32>} : vector<3x16xf32>, vector<16x128xf32>, vector<3x128xf32> -> vector<3x128xf32>
    %14 = vector.broadcast %4 : vector<3x1xf32> to vector<3x128xf32>
    %15 = arith.addf %13, %14 : vector<3x128xf32>
    %cst_11 = arith.constant dense<0xFF800000> : vector<128xf32>
    %16 = vector.multi_reduction <maximumf>, %15, %cst_11 [0] : vector<3x128xf32> to vector<128xf32>
    %17 = vector.shape_cast %16 : vector<128xf32> to vector<1x128xf32>
    %18 = vector.broadcast %17 : vector<1x128xf32> to vector<3x128xf32>
    %19 = arith.subf %15, %18 : vector<3x128xf32>
    %20 = math.exp %19 : vector<3x128xf32>
    %cst_12 = arith.constant dense<0.000000e+00> : vector<128xf32>
    %21 = vector.multi_reduction <add>, %20, %cst_12 [0] : vector<3x128xf32> to vector<128xf32>
    %22 = vector.shape_cast %21 : vector<128xf32> to vector<1x128xf32>
    %23 = math.log %22 : vector<1x128xf32>
    %24 = vector.broadcast %23 : vector<1x128xf32> to vector<3x128xf32>
    %25 = arith.subf %19, %24 : vector<3x128xf32>
    %c0_13 = arith.constant 0 : index
    %c0_14 = arith.constant 0 : index
    %26 = vector.load %arg6[%c0_13, %c0_14] : memref<3x128xf32, #tpu.memory_space<vmem>>, vector<3x128xf32>
    tpu.vector_store %arg6[%c0_13, %c0_14], %25 {strides = array<i32>} : memref<3x128xf32, #tpu.memory_space<vmem>>, vector<3x128xf32>,
    return
  }
  func.func @transform_0(%arg0: i32) -> (i32, i32) {
    %c0_i32 = arith.constant 0 : i32
    %c0_i32_0 = arith.constant 0 : i32
    return %c0_i32, %arg0 : i32, i32
  }
  func.func @transform_1(%arg0: i32) -> (i32, i32) {
    %c0_i32 = arith.constant 0 : i32
    %c0_i32_0 = arith.constant 0 : i32
    %c0_i32_1 = arith.constant 0 : i32
    return %c0_i32, %c0_i32_0 : i32, i32
  }
  func.func @transform_2(%arg0: i32) -> (i32, i32) {
    %c0_i32 = arith.constant 0 : i32
    %c0_i32_0 = arith.constant 0 : i32
    %c0_i32_1 = arith.constant 0 : i32
    return %c0_i32, %c0_i32_0 : i32, i32
  }
  func.func @transform_3(%arg0: i32) -> (i32, i32) {
    %c0_i32 = arith.constant 0 : i32
    %c0_i32_0 = arith.constant 0 : i32
    %c0_i32_1 = arith.constant 0 : i32
    return %c0_i32, %c0_i32_0 : i32, i32
  }
  func.func @transform_4(%arg0: i32) -> (i32, i32) {
    %c0_i32 = arith.constant 0 : i32
    %c0_i32_0 = arith.constant 0 : i32
    %c0_i32_1 = arith.constant 0 : i32
    return %c0_i32, %c0_i32_0 : i32, i32
  }
  func.func @transform_5(%arg0: i32) -> (i32, i32) {
    %c0_i32 = arith.constant 0 : i32
    %c0_i32_0 = arith.constant 0 : i32
    return %c0_i32, %arg0 : i32, i32
  }
}

</mosaic_0001>

<llo_original>
// kernel: tpu_custom_call.1
$region0: #{tpu_custom_call.1}
  #allocation0 [shape = 'u32[]', space=smem, size = 0x4, offset = 0x4, fixed_abs, tag = 'smem constant byte address 0x4 - core index']
  #allocation1 [shape = 'u32[144,128]{1,0:T(1,128)}', space=vmem, size = 0x12000, scoped, tag = 'internal scratch']
  %s0 = inlined_call_operand.vmem [shape: f32[4,200], index: 0, kind: input, shape index: {}]
  %s1 = inlined_call_operand.vmem [shape: f32[16,4], index: 1, kind: input, shape index: {}]
  %s2 = inlined_call_operand.vmem [shape: f32[16,1], index: 2, kind: input, shape index: {}]
  %s3 = inlined_call_operand.vmem [shape: f32[3,16], index: 3, kind: input, shape index: {}]
  %s4 = inlined_call_operand.vmem [shape: f32[3,1], index: 4, kind: input, shape index: {}]
  %s5 = inlined_call_operand.hbm [shape: f32[3,200], index: 5, kind: output, shape index: {}]
  %s6 = sld [smem:[#allocation0]]
  $region53: #{tpu_custom_call.1} parent=0
    _
  %s8 = ssub.s32 1, %s6
  %s9 = scalar_select 0, %s8, %s6
  $region1: #{tpu_custom_call.1} parent=0
    #allocation2 [shape = 'u8[4096]{0}', space=vmem, size = 0x1000, scoped, tag = 'output window, operand 0']
    #allocation3 [shape = 's32[2]{0}', space=sflag, size = 0x8, scoped, tag = 'scoped memory for tpu_custom_call.1']
    %10 = vsyncpa [#allocation3], 0
    %s11 = scalar_lea.sflag [#allocation3], 1
    %12 = vsyncpa %s11, 0
    loop: start=0, step=1, limit=4
    $region2: #{tpu_custom_call.1} parent=1 // loop_pre_header
      _
    $region3: #{tpu_custom_call.1} parent=1 // loop_header
      %s14 = sphi 0, %s18
      %p15 = scmp.ge.s32.totalorder %s14, 4
      %s24 = sphi 0, %s26
      %s27 = sphi 0, %s24
      %s28 = sphi 0, %s27
      %s44 = sphi 0, %s28
      %s48 = sphi 0, %s48
      %s50 = sphi 0, %s48
      %s51 = sphi 0, %s50
      %s65 = sphi 0, %s51
      %s69 = sphi 0, %s69
      %s71 = sphi 0, %s69
      %s72 = sphi 0, %s71
      %s86 = sphi 0, %s72
      %s90 = sphi 0, %s90
      %s92 = sphi 0, %s90
      %s93 = sphi 0, %s92
      %s107 = sphi 0, %s93
      %s111 = sphi 0, %s111
      %s113 = sphi 0, %s111
      %s114 = sphi 0, %s113
      %s128 = sphi 0, %s114
      %s134 = sphi 0, %s136
      %s137 = sphi 0, %s134
      %s138 = sphi 0, %s137
      %s154 = sphi 0, %s138
    $region4: #{tpu_custom_call.1} parent=1 // loop_header_branch
      %17 = sbr.rel (%p15) target = $region8
    $region5: #{tpu_custom_call.1} parent=1 // loop_body
      %s19 = ssub.s32 %s14, 1
      %s20 = ssub.s32 %s14, 2
      %s21 = sadd.s32 %s14, 1
      %s22 = ssub.s32 %s14, %s21
      %p23 = scmp.eq.s32.totalorder %s22, 0
      %s25 = sadd.s32 %s24, 1
      %s26 = scalar_select %p23, %s24, %s25
      %p29 = pneg %p23
      %p30 = scmp.eq.s32.totalorder %s14, 1
      %p31 = por %p29, %p30
      %p32 = scmp.ne.s32.totalorder %s24, %s27
      %p33 = scmp.eq.s32.totalorder %s14, 0
      %p34 = por %p32, %p33
      %p35 = scmp.ne.s32.totalorder %s24, %s27
      %p36 = scmp.eq.s32.totalorder %s19, 1
      %p37 = por %p35, %p36
      %p38 = scmp.ne.s32.totalorder %s27, %s28
      %p39 = scmp.eq.s32.totalorder %s19, 0
      %p40 = por %p38, %p39
      %p41 = scmp.ne.s32.totalorder %s27, %s28
      %p42 = scmp.eq.s32.totalorder %s20, 1
      %p43 = por %p41, %p42
      %p45 = scmp.ne.s32.totalorder %s28, %s44
      %p46 = scmp.eq.s32.totalorder %s20, 0
      %p47 = por %p45, %p46
      %s49 = sadd.s32 %s48, 1
      %p52 = scmp.eq.s32.totalorder %s14, 1
      %p53 = scmp.ne.s32.totalorder %s48, %s50
      %p54 = scmp.eq.s32.totalorder %s14, 0
      %p55 = por %p53, %p54
      %p56 = scmp.ne.s32.totalorder %s48, %s50
      %p57 = scmp.eq.s32.totalorder %s19, 1
      %p58 = por %p56, %p57
      %p59 = scmp.ne.s32.totalorder %s50, %s51
      %p60 = scmp.eq.s32.totalorder %s19, 0
      %p61 = por %p59, %p60
      %p62 = scmp.ne.s32.totalorder %s50, %s51
      %p63 = scmp.eq.s32.totalorder %s20, 1
      %p64 = por %p62, %p63
      %p66 = scmp.ne.s32.totalorder %s51, %s65
      %p67 = scmp.eq.s32.totalorder %s20, 0
      %p68 = por %p66, %p67
      %s70 = sadd.s32 %s69, 1
      %p73 = scmp.eq.s32.totalorder %s14, 1
      %p74 = scmp.ne.s32.totalorder %s69, %s71
      %p75 = scmp.eq.s32.totalorder %s14, 0
      %p76 = por %p74, %p75
      %p77 = scmp.ne.s32.totalorder %s69, %s71
      %p78 = scmp.eq.s32.totalorder %s19, 1
      %p79 = por %p77, %p78
      %p80 = scmp.ne.s32.totalorder %s71, %s72
      %p81 = scmp.eq.s32.totalorder %s19, 0
      %p82 = por %p80, %p81
      %p83 = scmp.ne.s32.totalorder %s71, %s72
      %p84 = scmp.eq.s32.totalorder %s20, 1
      %p85 = por %p83, %p84
      %p87 = scmp.ne.s32.totalorder %s72, %s86
      %p88 = scmp.eq.s32.totalorder %s20, 0
      %p89 = por %p87, %p88
      %s91 = sadd.s32 %s90, 1
      %p94 = scmp.eq.s32.totalorder %s14, 1
      %p95 = scmp.ne.s32.totalorder %s90, %s92
      %p96 = scmp.eq.s32.totalorder %s14, 0
      %p97 = por %p95, %p96
      %p98 = scmp.ne.s32.totalorder %s90, %s92
      %p99 = scmp.eq.s32.totalorder %s19, 1
      %p100 = por %p98, %p99
      %p101 = scmp.ne.s32.totalorder %s92, %s93
      %p102 = scmp.eq.s32.totalorder %s19, 0
      %p103 = por %p101, %p102
      %p104 = scmp.ne.s32.totalorder %s92, %s93
      %p105 = scmp.eq.s32.totalorder %s20, 1
      %p106 = por %p104, %p105
      %p108 = scmp.ne.s32.totalorder %s93, %s107
      %p109 = scmp.eq.s32.totalorder %s20, 0
      %p110 = por %p108, %p109
      %s112 = sadd.s32 %s111, 1
      %p115 = scmp.eq.s32.totalorder %s14, 1
      %p116 = scmp.ne.s32.totalorder %s111, %s113
      %p117 = scmp.eq.s32.totalorder %s14, 0
      %p118 = por %p116, %p117
      %p119 = scmp.ne.s32.totalorder %s111, %s113
      %p120 = scmp.eq.s32.totalorder %s19, 1
      %p121 = por %p119, %p120
      %p122 = scmp.ne.s32.totalorder %s113, %s114
      %p123 = scmp.eq.s32.totalorder %s19, 0
      %p124 = por %p122, %p123
      %p125 = scmp.ne.s32.totalorder %s113, %s114
      %p126 = scmp.eq.s32.totalorder %s20, 1
      %p127 = por %p125, %p126
      %p129 = scmp.ne.s32.totalorder %s114, %s128
      %p130 = scmp.eq.s32.totalorder %s20, 0
      %p131 = por %p129, %p130
      %s132 = ssub.s32 %s14, %s21
      %p133 = scmp.eq.s32.totalorder %s132, 0
      %s135 = sadd.s32 %s134, 1
      %s136 = scalar_select %p133, %s134, %s135
      %p139 = pneg %p133
      %p140 = scmp.eq.s32.totalorder %s14, 1
      %p141 = por %p139, %p140
      %p142 = scmp.ne.s32.totalorder %s134, %s137
      %p143 = scmp.eq.s32.totalorder %s14, 0
      %p144 = por %p142, %p143
      %p145 = scmp.ne.s32.totalorder %s134, %s137
      %p146 = scmp.eq.s32.totalorder %s19, 1
      %p147 = por %p145, %p146
      %p148 = scmp.ne.s32.totalorder %s137, %s138
      %p149 = scmp.eq.s32.totalorder %s19, 0
      %p150 = por %p148, %p149
      %p151 = scmp.ne.s32.totalorder %s137, %s138
      %p152 = scmp.eq.s32.totalorder %s20, 1
      %p153 = por %p151, %p152
      %p155 = scmp.ne.s32.totalorder %s138, %s154
      %p156 = scmp.eq.s32.totalorder %s20, 0
      %p157 = por %p155, %p156
      %p158 = scmp.le.s32.totalorder 1, %s14
      %p159 = scmp.lt.s32.totalorder %s14, 3
      %p160 = pnand %p158, %p159
      %p161 = pneg %p160
      // Predicated region
      $region9: #{tpu_custom_call.1} parent=5 // pred_check
        _
      $region10: #{tpu_custom_call.1} parent=5 // pred_check_branch
        %163 = sbr.rel (%p160) target = $region12
      $region11: #{tpu_custom_call.1} parent=5 // pred_region
        %s164 = ssub.s32 %s14, 1
        // Predicated region
        $region13: #{tpu_custom_call.1} parent=11 // pred_check
          %p165 = pneg %p61
        $region14: #{tpu_custom_call.1} parent=11 // pred_check_branch
          %167 = sbr.rel (%p165) target = $region16
        $region15: #{tpu_custom_call.1} parent=11 // pred_region
          _
        $region16: #{tpu_custom_call.1} parent=11 // pred_fallthru
          _
        // Predicated region
        $region17: #{tpu_custom_call.1} parent=11 // pred_check
          %p168 = pneg %p82
        $region18: #{tpu_custom_call.1} parent=11 // pred_check_branch
          %170 = sbr.rel (%p168) target = $region20
        $region19: #{tpu_custom_call.1} parent=11 // pred_region
          _
        $region20: #{tpu_custom_call.1} parent=11 // pred_fallthru
          _
        // Predicated region
        $region21: #{tpu_custom_call.1} parent=11 // pred_check
          %p171 = pneg %p103
        $region22: #{tpu_custom_call.1} parent=11 // pred_check_branch
          %173 = sbr.rel (%p171) target = $region24
        $region23: #{tpu_custom_call.1} parent=11 // pred_region
          _
        $region24: #{tpu_custom_call.1} parent=11 // pred_fallthru
          _
        // Predicated region
        $region25: #{tpu_custom_call.1} parent=11 // pred_check
          %p174 = pneg %p124
        $region26: #{tpu_custom_call.1} parent=11 // pred_check_branch
          %176 = sbr.rel (%p174) target = $region28
        $region27: #{tpu_custom_call.1} parent=11 // pred_region
          _
        $region28: #{tpu_custom_call.1} parent=11 // pred_fallthru
          _
      $region12: #{tpu_custom_call.1} parent=5 // pred_fallthru
        _
      %p177 = scmp.lt.s32.totalorder %s14, 2
      // Predicated region
      $region29: #{tpu_custom_call.1} parent=5 // pred_check
        %p178 = pneg %p177
      $region30: #{tpu_custom_call.1} parent=5 // pred_check_branch
        %180 = sbr.rel (%p178) target = $region32
      $region31: #{tpu_custom_call.1} parent=5 // pred_region
        // Predicated region
        $region33: #{tpu_custom_call.1} parent=31 // pred_check
          %p181 = pneg %p34
        $region34: #{tpu_custom_call.1} parent=31 // pred_check_branch
          %183 = sbr.rel (%p181) target = $region36
        $region35: #{tpu_custom_call.1} parent=31 // pred_region
          %p184 = scmp.lt.s32.totalorder %s14, 1
          %s185 = scalar_select %p184, %s14, 1
          %s186 = smul.addr %s185, 4
          %s187 = scalar_lea.vmem %s0, %s186
        $region36: #{tpu_custom_call.1} parent=31 // pred_fallthru
          _
      $region32: #{tpu_custom_call.1} parent=5 // pred_fallthru
        _
      %p188 = scmp.le.s32.totalorder 1, %s14
      %p189 = scmp.lt.s32.totalorder %s14, 3
      %p190 = pnand %p188, %p189
      %p191 = pneg %p190
      // Predicated region
      $region37: #{tpu_custom_call.1} parent=5 // pred_check
        _
      $region38: #{tpu_custom_call.1} parent=5 // pred_check_branch
        %193 = sbr.rel (%p190) target = $region40
      $region39: #{tpu_custom_call.1} parent=5 // pred_region
        %s194 = ssub.s32 %s14, 1
        %p195 = scmp.lt.s32.totalorder %s19, 1
        %s196 = scalar_select %p195, %s19, 1
        %s197 = smul.addr %s196, 4
        %s198 = scalar_lea.vmem %s0, %s197
        %p199 = pneg %p40
        %p200 = pneg %p37
        %p201 = pneg %p61
        %p202 = pneg %p58
        %p203 = pneg %p82
        %p204 = pneg %p79
        %p205 = pneg %p103
        %p206 = pneg %p100
        %p207 = pneg %p124
        %p208 = pneg %p121
        %p209 = pneg %p150
        %p210 = pneg %p147
        %s211 = sand.u32 %s137, 1
        %s212 = scalar_lea.sflag [#allocation3], %s211
        %s213 = sand.u32 %s137, 1
        %s214 = smul.addr %s213, 4
        %s215 = scalar_lea.vmem [#allocation2], %s214
        %p216 = scmp.lt.s32.totalorder %s19, 1
        %s217 = scalar_select %p216, %s19, 1
        %s218 = smul.addr %s217, 4
        %s219 = scalar_lea.vmem %s0, %s218
        %v220 = vld [vmem:[%s219] sm:$0xf]
        %v221 = vld [vmem:[%s1] sm:$0xff]
        %v222 = vld [vmem:[%s1 + $0x8] sm:$0xff]
        %v223 = vld [vmem:[%s2] sm:$0xff]
        %v224 = vld [vmem:[%s2 + $0x8] sm:$0xff]
        %v225 = vld [vmem:[%s3] sm:$0x7]
        %v226 = vld [vmem:[%s4] sm:$0x7]
        %228 = vset.pattern.permute.xlu0 0
        %229 = vperm.xlu0 %228, %v223
        %v230 = vpop.permute.xlu0 %229
        %233 = vset.pattern.permute.xlu0 0
        %234 = vperm.xlu0 %233, %v224
        %v235 = vpop.permute.xlu0 %234
        %vm237 = vcmask 31744
        %v239 = vsel %vm237, %v221, 0
        %v242 = vsel %vm237, %v222, 0
        %vm244 = vcmask 1043456
        %v246 = vsel %vm244, %v220, 0
        %248 = vmatprep.subr.mxu0 0.0
        %v249 = vand.u32 %v246, 4294901760
        %250 = vmatpush1.msra.mxu0 %v249
        %251 = vmatprep.subr.mxu0 0.0
        %252 = vmatpush1.msra.mxu0 0.0
        %253 = vmatprep.subr.mxu0 0.0
        %254 = vmatpush1.msra.mxu0 0.0
        %255 = vmatprep.subr.mxu0 0.0
        %256 = vmatpush1.msra.mxu0 0.0
        %257 = vmatprep.subr.mxu0 0.0
        %258 = vmatpush1.msra.mxu0 0.0
        %259 = vmatprep.subr.mxu0 0.0
        %260 = vmatpush1.msra.mxu0 0.0
        %261 = vmatprep.subr.mxu0 0.0
        %262 = vmatpush1.msra.mxu0 0.0
        %263 = vmatprep.subr.mxu0 0.0
        %264 = vmatpush1.msra.mxu0 0.0
        %265 = vmatprep.subr.mxu0 0.0
        %266 = vmatpush1.msra.mxu0 0.0
        %267 = vmatprep.subr.mxu0 0.0
        %268 = vmatpush1.msra.mxu0 0.0
        %269 = vmatprep.subr.mxu0 0.0
        %270 = vmatpush1.msra.mxu0 0.0
        %271 = vmatprep.subr.mxu0 0.0
        %272 = vmatpush1.msra.mxu0 0.0
        %273 = vmatprep.subr.mxu0 0.0
        %274 = vmatpush1.msra.mxu0 0.0
        %275 = vmatprep.subr.mxu0 0.0
        %276 = vmatpush1.msra.mxu0 0.0
        %277 = vmatprep.subr.mxu0 0.0
        %278 = vmatpush1.msra.mxu0 0.0
        %279 = vmatprep.subr.mxu0 0.0
        %280 = vmatpush1.msra.mxu0 0.0
        %281 = vmatprep.subr.mxu0 0.0
        %282 = vmatpush1.msra.mxu0 0.0
        %283 = vmatprep.subr.mxu0 0.0
        %284 = vmatpush1.msra.mxu0 0.0
        %285 = vmatprep.subr.mxu0 0.0
        %286 = vmatpush1.msra.mxu0 0.0
        %287 = vmatprep.subr.mxu0 0.0
        %288 = vmatpush1.msra.mxu0 0.0
        %289 = vmatprep.subr.mxu0 0.0
        %290 = vmatpush1.msra.mxu0 0.0
        %291 = vmatprep.subr.mxu0 0.0
        %292 = vmatpush1.msra.mxu0 0.0
        %293 = vmatprep.subr.mxu0 0.0
        %294 = vmatpush1.msra.mxu0 0.0
        %295 = vmatprep.subr.mxu0 0.0
        %296 = vmatpush1.msra.mxu0 0.0
        %297 = vmatprep.subr.mxu0 0.0
        %298 = vmatpush1.msra.mxu0 0.0
        %299 = vmatprep.subr.mxu0 0.0
        %300 = vmatpush1.msra.mxu0 0.0
        %301 = vmatprep.subr.mxu0 0.0
        %302 = vmatpush1.msra.mxu0 0.0
        %303 = vmatprep.subr.mxu0 0.0
        %304 = vmatpush1.msra.mxu0 0.0
        %305 = vmatprep.subr.mxu0 0.0
        %306 = vmatpush1.msra.mxu0 0.0
        %307 = vmatprep.subr.mxu0 0.0
        %308 = vmatpush1.msra.mxu0 0.0
        %309 = vmatprep.subr.mxu0 0.0
        %310 = vmatpush1.msra.mxu0 0.0
        %311 = vmatprep.subr.mxu0 0.0
        %312 = vmatpush1.msra.mxu0 0.0
        %313 = vmatprep.mubr.f32.mxu0 0.0
        %v314 = vand.u32 %v239, 4294901760
        %v315 = vsub.f32 %v239, %v314
        %v316 = vand.u32 %v315, 4294901760
        %v317 = vsub.f32 %v315, %v316
        %v318 = vand.u32 %v317, 4294901760
        %319 = vmatmul.mubr.f32.gmra.mrb[0].mxu0 %v318
        %v320 = vpop.f32.mrb[0].mxu0
        %v321 = vadd.f32 %v230, %v320
        %v322 = vpop.f32.mrb[0].mxu0
        %323 = vmatprep.mubr.f32.mxu0 0.0
        %v324 = vand.u32 %v242, 4294901760
        %v325 = vsub.f32 %v242, %v324
        %v326 = vand.u32 %v325, 4294901760
        %v327 = vsub.f32 %v325, %v326
        %v328 = vand.u32 %v327, 4294901760
        %329 = vmatmul.mubr.f32.gmra.mrb[0].mxu0 %v328
        %v330 = vpop.f32.mrb[0].mxu0
        %v331 = vadd.f32 %v235, %v330
        %v332 = vpop.f32.mrb[0].mxu0
        %333 = vdwg.mxu0
        %334 = vmatprep.subr.mxu0 0.0
        %v335 = vand.u32 %v246, 4294901760
        %v336 = vsub.f32 %v246, %v335
        %v337 = vand.u32 %v336, 4294901760
        %v338 = vsub.f32 %v336, %v337
        %v339 = vand.u32 %v338, 4294901760
        %340 = vmatpush1.msra.mxu0 %v339
        %341 = vmatprep.subr.mxu0 0.0
        %342 = vmatpush1.msra.mxu0 0.0
        %343 = vmatprep.subr.mxu0 0.0
        %344 = vmatpush1.msra.mxu0 0.0
        %345 = vmatprep.subr.mxu0 0.0
        %346 = vmatpush1.msra.mxu0 0.0
        %347 = vmatprep.subr.mxu0 0.0
        %348 = vmatpush1.msra.mxu0 0.0
        %349 = vmatprep.subr.mxu0 0.0
        %350 = vmatpush1.msra.mxu0 0.0
        %351 = vmatprep.subr.mxu0 0.0
        %352 = vmatpush1.msra.mxu0 0.0
        %353 = vmatprep.subr.mxu0 0.0
        %354 = vmatpush1.msra.mxu0 0.0
        %355 = vmatprep.subr.mxu0 0.0
        %356 = vmatpush1.msra.mxu0 0.0
        %357 = vmatprep.subr.mxu0 0.0
        %358 = vmatpush1.msra.mxu0 0.0
        %359 = vmatprep.subr.mxu0 0.0
        %360 = vmatpush1.msra.mxu0 0.0
        %361 = vmatprep.subr.mxu0 0.0
        %362 = vmatpush1.msra.mxu0 0.0
        %363 = vmatprep.subr.mxu0 0.0
        %364 = vmatpush1.msra.mxu0 0.0
        %365 = vmatprep.subr.mxu0 0.0
        %366 = vmatpush1.msra.mxu0 0.0
        %367 = vmatprep.subr.mxu0 0.0
        %368 = vmatpush1.msra.mxu0 0.0
        %369 = vmatprep.subr.mxu0 0.0
        %370 = vmatpush1.msra.mxu0 0.0
        %371 = vmatprep.subr.mxu0 0.0
        %372 = vmatpush1.msra.mxu0 0.0
        %373 = vmatprep.subr.mxu0 0.0
        %374 = vmatpush1.msra.mxu0 0.0
        %375 = vmatprep.subr.mxu0 0.0
        %376 = vmatpush1.msra.mxu0 0.0
        %377 = vmatprep.subr.mxu0 0.0
        %378 = vmatpush1.msra.mxu0 0.0
        %379 = vmatprep.subr.mxu0 0.0
        %380 = vmatpush1.msra.mxu0 0.0
        %381 = vmatprep.subr.mxu0 0.0
        %382 = vmatpush1.msra.mxu0 0.0
        %383 = vmatprep.subr.mxu0 0.0
        %384 = vmatpush1.msra.mxu0 0.0
        %385 = vmatprep.subr.mxu0 0.0
        %386 = vmatpush1.msra.mxu0 0.0
        %387 = vmatprep.subr.mxu0 0.0
        %388 = vmatpush1.msra.mxu0 0.0
        %389 = vmatprep.subr.mxu0 0.0
        %390 = vmatpush1.msra.mxu0 0.0
        %391 = vmatprep.subr.mxu0 0.0
        %392 = vmatpush1.msra.mxu0 0.0
        %393 = vmatprep.subr.mxu0 0.0
        %394 = vmatpush1.msra.mxu0 0.0
        %395 = vmatprep.subr.mxu0 0.0
        %396 = vmatpush1.msra.mxu0 0.0
        %397 = vmatprep.subr.mxu0 0.0
        %398 = vmatpush1.msra.mxu0 0.0
        %399 = vmatprep.subr.mxu0 0.0
        %400 = vmatpush1.msra.mxu0 0.0
        %401 = vmatprep.subr.mxu0 0.0
        %402 = vmatpush1.msra.mxu0 0.0
        %403 = vmatprep.mubr.f32.mxu0 0.0
        %v404 = vand.u32 %v239, 4294901760
        %405 = vmatmul.mubr.f32.gmra.mrb[0].mxu0 %v404
        %v406 = vpop.f32.mrb[0].mxu0
        %v407 = vadd.f32 %v321, %v406
        %v408 = vpop.f32.mrb[0].mxu0
        %409 = vmatprep.mubr.f32.mxu0 0.0
        %v410 = vand.u32 %v242, 4294901760
        %411 = vmatmul.mubr.f32.gmra.mrb[0].mxu0 %v410
        %v412 = vpop.f32.mrb[0].mxu0
        %v413 = vadd.f32 %v331, %v412
        %v414 = vpop.f32.mrb[0].mxu0
        %415 = vdwg.mxu0
        %416 = vmatprep.subr.mxu0 0.0
        %v417 = vand.u32 %v246, 4294901760
        %v418 = vsub.f32 %v246, %v417
        %419 = vmatpush1.msra.mxu0 %v418
        %420 = vmatprep.subr.mxu0 0.0
        %421 = vmatpush1.msra.mxu0 0.0
        %422 = vmatprep.subr.mxu0 0.0
        %423 = vmatpush1.msra.mxu0 0.0
        %424 = vmatprep.subr.mxu0 0.0
        %425 = vmatpush1.msra.mxu0 0.0
        %426 = vmatprep.subr.mxu0 0.0
        %427 = vmatpush1.msra.mxu0 0.0
        %428 = vmatprep.subr.mxu0 0.0
        %429 = vmatpush1.msra.mxu0 0.0
        %430 = vmatprep.subr.mxu0 0.0
        %431 = vmatpush1.msra.mxu0 0.0
        %432 = vmatprep.subr.mxu0 0.0
        %433 = vmatpush1.msra.mxu0 0.0
        %434 = vmatprep.subr.mxu0 0.0
        %435 = vmatpush1.msra.mxu0 0.0
        %436 = vmatprep.subr.mxu0 0.0
        %437 = vmatpush1.msra.mxu0 0.0
        %438 = vmatprep.subr.mxu0 0.0
        %439 = vmatpush1.msra.mxu0 0.0
        %440 = vmatprep.subr.mxu0 0.0
        %441 = vmatpush1.msra.mxu0 0.0
        %442 = vmatprep.subr.mxu0 0.0
        %443 = vmatpush1.msra.mxu0 0.0
        %444 = vmatprep.subr.mxu0 0.0
        %445 = vmatpush1.msra.mxu0 0.0
        %446 = vmatprep.subr.mxu0 0.0
        %447 = vmatpush1.msra.mxu0 0.0
        %448 = vmatprep.subr.mxu0 0.0
        %449 = vmatpush1.msra.mxu0 0.0
        %450 = vmatprep.subr.mxu0 0.0
        %451 = vmatpush1.msra.mxu0 0.0
        %452 = vmatprep.subr.mxu0 0.0
        %453 = vmatpush1.msra.mxu0 0.0
        %454 = vmatprep.subr.mxu0 0.0
        %455 = vmatpush1.msra.mxu0 0.0
        %456 = vmatprep.subr.mxu0 0.0
        %457 = vmatpush1.msra.mxu0 0.0
        %458 = vmatprep.subr.mxu0 0.0
        %459 = vmatpush1.msra.mxu0 0.0
        %460 = vmatprep.subr.mxu0 0.0
        %461 = vmatpush1.msra.mxu0 0.0
        %462 = vmatprep.subr.mxu0 0.0
        %463 = vmatpush1.msra.mxu0 0.0
        %464 = vmatprep.subr.mxu0 0.0
        %465 = vmatpush1.msra.mxu0 0.0
        %466 = vmatprep.subr.mxu0 0.0
        %467 = vmatpush1.msra.mxu0 0.0
        %468 = vmatprep.subr.mxu0 0.0
        %469 = vmatpush1.msra.mxu0 0.0
        %470 = vmatprep.subr.mxu0 0.0
        %471 = vmatpush1.msra.mxu0 0.0
        %472 = vmatprep.subr.mxu0 0.0
        %473 = vmatpush1.msra.mxu0 0.0
        %474 = vmatprep.subr.mxu0 0.0
        %475 = vmatpush1.msra.mxu0 0.0
        %476 = vmatprep.subr.mxu0 0.0
        %477 = vmatpush1.msra.mxu0 0.0
        %478 = vmatprep.subr.mxu0 0.0
        %479 = vmatpush1.msra.mxu0 0.0
        %480 = vmatprep.subr.mxu0 0.0
        %481 = vmatpush1.msra.mxu0 0.0
        %482 = vmatprep.mubr.f32.mxu0 0.0
        %v483 = vand.u32 %v239, 4294901760
        %v484 = vsub.f32 %v239, %v483
        %485 = vmatmul.mubr.f32.gmra.mrb[0].mxu0 %v484
        %v486 = vpop.f32.mrb[0].mxu0
        %v487 = vadd.f32 %v407, %v486
        %v488 = vpop.f32.mrb[0].mxu0
        %489 = vmatprep.mubr.f32.mxu0 0.0
        %v490 = vand.u32 %v242, 4294901760
        %v491 = vsub.f32 %v242, %v490
        %492 = vmatmul.mubr.f32.gmra.mrb[0].mxu0 %v491
        %v493 = vpop.f32.mrb[0].mxu0
        %v494 = vadd.f32 %v413, %v493
        %v495 = vpop.f32.mrb[0].mxu0
        %496 = vdwg.mxu0
        %497 = vmatprep.subr.mxu0 0.0
        %v498 = vand.u32 %v246, 4294901760
        %499 = vmatpush1.msra.mxu0 %v498
        %500 = vmatprep.subr.mxu0 0.0
        %501 = vmatpush1.msra.mxu0 0.0
        %502 = vmatprep.subr.mxu0 0.0
        %503 = vmatpush1.msra.mxu0 0.0
        %504 = vmatprep.subr.mxu0 0.0
        %505 = vmatpush1.msra.mxu0 0.0
        %506 = vmatprep.subr.mxu0 0.0
        %507 = vmatpush1.msra.mxu0 0.0
        %508 = vmatprep.subr.mxu0 0.0
        %509 = vmatpush1.msra.mxu0 0.0
        %510 = vmatprep.subr.mxu0 0.0
        %511 = vmatpush1.msra.mxu0 0.0
        %512 = vmatprep.subr.mxu0 0.0
        %513 = vmatpush1.msra.mxu0 0.0
        %514 = vmatprep.subr.mxu0 0.0
        %515 = vmatpush1.msra.mxu0 0.0
        %516 = vmatprep.subr.mxu0 0.0
        %517 = vmatpush1.msra.mxu0 0.0
        %518 = vmatprep.subr.mxu0 0.0
        %519 = vmatpush1.msra.mxu0 0.0
        %520 = vmatprep.subr.mxu0 0.0
        %521 = vmatpush1.msra.mxu0 0.0
        %522 = vmatprep.subr.mxu0 0.0
        %523 = vmatpush1.msra.mxu0 0.0
        %524 = vmatprep.subr.mxu0 0.0
        %525 = vmatpush1.msra.mxu0 0.0
        %526 = vmatprep.subr.mxu0 0.0
        %527 = vmatpush1.msra.mxu0 0.0
        %528 = vmatprep.subr.mxu0 0.0
        %529 = vmatpush1.msra.mxu0 0.0
        %530 = vmatprep.subr.mxu0 0.0
        %531 = vmatpush1.msra.mxu0 0.0
        %532 = vmatprep.subr.mxu0 0.0
        %533 = vmatpush1.msra.mxu0 0.0
        %534 = vmatprep.subr.mxu0 0.0
        %535 = vmatpush1.msra.mxu0 0.0
        %536 = vmatprep.subr.mxu0 0.0
        %537 = vmatpush1.msra.mxu0 0.0
        %538 = vmatprep.subr.mxu0 0.0
        %539 = vmatpush1.msra.mxu0 0.0
        %540 = vmatprep.subr.mxu0 0.0
        %541 = vmatpush1.msra.mxu0 0.0
        %542 = vmatprep.subr.mxu0 0.0
        %543 = vmatpush1.msra.mxu0 0.0
        %544 = vmatprep.subr.mxu0 0.0
        %545 = vmatpush1.msra.mxu0 0.0
        %546 = vmatprep.subr.mxu0 0.0
        %547 = vmatpush1.msra.mxu0 0.0
        %548 = vmatprep.subr.mxu0 0.0
        %549 = vmatpush1.msra.mxu0 0.0
        %550 = vmatprep.subr.mxu0 0.0
        %551 = vmatpush1.msra.mxu0 0.0
        %552 = vmatprep.subr.mxu0 0.0
        %553 = vmatpush1.msra.mxu0 0.0
        %554 = vmatprep.subr.mxu0 0.0
        %555 = vmatpush1.msra.mxu0 0.0
        %556 = vmatprep.subr.mxu0 0.0
        %557 = vmatpush1.msra.mxu0 0.0
        %558 = vmatprep.subr.mxu0 0.0
        %559 = vmatpush1.msra.mxu0 0.0
        %560 = vmatprep.subr.mxu0 0.0
        %561 = vmatpush1.msra.mxu0 0.0
        %562 = vmatprep.mubr.f32.mxu0 0.0
        %v563 = vand.u32 %v239, 4294901760
        %v564 = vsub.f32 %v239, %v563
        %v565 = vand.u32 %v564, 4294901760
        %566 = vmatmul.mubr.f32.gmra.mrb[0].mxu0 %v565
        %v567 = vpop.f32.mrb[0].mxu0
        %v568 = vadd.f32 %v487, %v567
        %v569 = vpop.f32.mrb[0].mxu0
        %570 = vmatprep.mubr.f32.mxu0 0.0
        %v571 = vand.u32 %v242, 4294901760
        %v572 = vsub.f32 %v242, %v571
        %v573 = vand.u32 %v572, 4294901760
        %574 = vmatmul.mubr.f32.gmra.mrb[0].mxu0 %v573
        %v575 = vpop.f32.mrb[0].mxu0
        %v576 = vadd.f32 %v494, %v575
        %v577 = vpop.f32.mrb[0].mxu0
        %578 = vdwg.mxu0
        %579 = vmatprep.subr.mxu0 0.0
        %v580 = vand.u32 %v246, 4294901760
        %v581 = vsub.f32 %v246, %v580
        %v582 = vand.u32 %v581, 4294901760
        %583 = vmatpush1.msra.mxu0 %v582
        %584 = vmatprep.subr.mxu0 0.0
        %585 = vmatpush1.msra.mxu0 0.0
        %586 = vmatprep.subr.mxu0 0.0
        %587 = vmatpush1.msra.mxu0 0.0
        %588 = vmatprep.subr.mxu0 0.0
        %589 = vmatpush1.msra.mxu0 0.0
        %590 = vmatprep.subr.mxu0 0.0
        %591 = vmatpush1.msra.mxu0 0.0
        %592 = vmatprep.subr.mxu0 0.0
        %593 = vmatpush1.msra.mxu0 0.0
        %594 = vmatprep.subr.mxu0 0.0
        %595 = vmatpush1.msra.mxu0 0.0
        %596 = vmatprep.subr.mxu0 0.0
        %597 = vmatpush1.msra.mxu0 0.0
        %598 = vmatprep.subr.mxu0 0.0
        %599 = vmatpush1.msra.mxu0 0.0
        %600 = vmatprep.subr.mxu0 0.0
        %601 = vmatpush1.msra.mxu0 0.0
        %602 = vmatprep.subr.mxu0 0.0
        %603 = vmatpush1.msra.mxu0 0.0
        %604 = vmatprep.subr.mxu0 0.0
        %605 = vmatpush1.msra.mxu0 0.0
        %606 = vmatprep.subr.mxu0 0.0
        %607 = vmatpush1.msra.mxu0 0.0
        %608 = vmatprep.subr.mxu0 0.0
        %609 = vmatpush1.msra.mxu0 0.0
        %610 = vmatprep.subr.mxu0 0.0
        %611 = vmatpush1.msra.mxu0 0.0
        %612 = vmatprep.subr.mxu0 0.0
        %613 = vmatpush1.msra.mxu0 0.0
        %614 = vmatprep.subr.mxu0 0.0
        %615 = vmatpush1.msra.mxu0 0.0
        %616 = vmatprep.subr.mxu0 0.0
        %617 = vmatpush1.msra.mxu0 0.0
        %618 = vmatprep.subr.mxu0 0.0
        %619 = vmatpush1.msra.mxu0 0.0
        %620 = vmatprep.subr.mxu0 0.0
        %621 = vmatpush1.msra.mxu0 0.0
        %622 = vmatprep.subr.mxu0 0.0
        %623 = vmatpush1.msra.mxu0 0.0
        %624 = vmatprep.subr.mxu0 0.0
        %625 = vmatpush1.msra.mxu0 0.0
        %626 = vmatprep.subr.mxu0 0.0
        %627 = vmatpush1.msra.mxu0 0.0
        %628 = vmatprep.subr.mxu0 0.0
        %629 = vmatpush1.msra.mxu0 0.0
        %630 = vmatprep.subr.mxu0 0.0
        %631 = vmatpush1.msra.mxu0 0.0
        %632 = vmatprep.subr.mxu0 0.0
        %633 = vmatpush1.msra.mxu0 0.0
        %634 = vmatprep.subr.mxu0 0.0
        %635 = vmatpush1.msra.mxu0 0.0
        %636 = vmatprep.subr.mxu0 0.0
        %637 = vmatpush1.msra.mxu0 0.0
        %638 = vmatprep.subr.mxu0 0.0
        %639 = vmatpush1.msra.mxu0 0.0
        %640 = vmatprep.subr.mxu0 0.0
        %641 = vmatpush1.msra.mxu0 0.0
        %642 = vmatprep.subr.mxu0 0.0
        %643 = vmatpush1.msra.mxu0 0.0
        %644 = vmatprep.subr.mxu0 0.0
        %645 = vmatpush1.msra.mxu0 0.0
        %646 = vmatprep.mubr.f32.mxu0 0.0
        %v647 = vand.u32 %v239, 4294901760
        %648 = vmatmul.mubr.f32.gmra.mrb[0].mxu0 %v647
        %v649 = vpop.f32.mrb[0].mxu0
        %v650 = vadd.f32 %v568, %v649
        %v651 = vpop.f32.mrb[0].mxu0
        %652 = vmatprep.mubr.f32.mxu0 0.0
        %v653 = vand.u32 %v242, 4294901760
        %654 = vmatmul.mubr.f32.gmra.mrb[0].mxu0 %v653
        %v655 = vpop.f32.mrb[0].mxu0
        %v656 = vadd.f32 %v576, %v655
        %v657 = vpop.f32.mrb[0].mxu0
        %658 = vdwg.mxu0
        %659 = vmatprep.subr.mxu0 0.0
        %v660 = vand.u32 %v246, 4294901760
        %661 = vmatpush1.msra.mxu0 %v660
        %662 = vmatprep.subr.mxu0 0.0
        %663 = vmatpush1.msra.mxu0 0.0
        %664 = vmatprep.subr.mxu0 0.0
        %665 = vmatpush1.msra.mxu0 0.0
        %666 = vmatprep.subr.mxu0 0.0
        %667 = vmatpush1.msra.mxu0 0.0
        %668 = vmatprep.subr.mxu0 0.0
        %669 = vmatpush1.msra.mxu0 0.0
        %670 = vmatprep.subr.mxu0 0.0
        %671 = vmatpush1.msra.mxu0 0.0
        %672 = vmatprep.subr.mxu0 0.0
        %673 = vmatpush1.msra.mxu0 0.0
        %674 = vmatprep.subr.mxu0 0.0
        %675 = vmatpush1.msra.mxu0 0.0
        %676 = vmatprep.subr.mxu0 0.0
        %677 = vmatpush1.msra.mxu0 0.0
        %678 = vmatprep.subr.mxu0 0.0
        %679 = vmatpush1.msra.mxu0 0.0
        %680 = vmatprep.subr.mxu0 0.0
        %681 = vmatpush1.msra.mxu0 0.0
        %682 = vmatprep.subr.mxu0 0.0
        %683 = vmatpush1.msra.mxu0 0.0
        %684 = vmatprep.subr.mxu0 0.0
        %685 = vmatpush1.msra.mxu0 0.0
        %686 = vmatprep.subr.mxu0 0.0
        %687 = vmatpush1.msra.mxu0 0.0
        %688 = vmatprep.subr.mxu0 0.0
        %689 = vmatpush1.msra.mxu0 0.0
        %690 = vmatprep.subr.mxu0 0.0
        %691 = vmatpush1.msra.mxu0 0.0
        %692 = vmatprep.subr.mxu0 0.0
        %693 = vmatpush1.msra.mxu0 0.0
        %694 = vmatprep.subr.mxu0 0.0
        %695 = vmatpush1.msra.mxu0 0.0
        %696 = vmatprep.subr.mxu0 0.0
        %697 = vmatpush1.msra.mxu0 0.0
        %698 = vmatprep.subr.mxu0 0.0
        %699 = vmatpush1.msra.mxu0 0.0
        %700 = vmatprep.subr.mxu0 0.0
        %701 = vmatpush1.msra.mxu0 0.0
        %702 = vmatprep.subr.mxu0 0.0
        %703 = vmatpush1.msra.mxu0 0.0
        %704 = vmatprep.subr.mxu0 0.0
        %705 = vmatpush1.msra.mxu0 0.0
        %706 = vmatprep.subr.mxu0 0.0
        %707 = vmatpush1.msra.mxu0 0.0
        %708 = vmatprep.subr.mxu0 0.0
        %709 = vmatpush1.msra.mxu0 0.0
        %710 = vmatprep.subr.mxu0 0.0
        %711 = vmatpush1.msra.mxu0 0.0
        %712 = vmatprep.subr.mxu0 0.0
        %713 = vmatpush1.msra.mxu0 0.0
        %714 = vmatprep.subr.mxu0 0.0
        %715 = vmatpush1.msra.mxu0 0.0
        %716 = vmatprep.subr.mxu0 0.0
        %717 = vmatpush1.msra.mxu0 0.0
        %718 = vmatprep.subr.mxu0 0.0
        %719 = vmatpush1.msra.mxu0 0.0
        %720 = vmatprep.subr.mxu0 0.0
        %721 = vmatpush1.msra.mxu0 0.0
        %722 = vmatprep.subr.mxu0 0.0
        %723 = vmatpush1.msra.mxu0 0.0
        %724 = vmatprep.mubr.f32.mxu0 0.0
        %v725 = vand.u32 %v239, 4294901760
        %726 = vmatmul.mubr.f32.gmra.mrb[0].mxu0 %v725
        %v727 = vpop.f32.mrb[0].mxu0
        %v728 = vadd.f32 %v650, %v727
        %v729 = vpop.f32.mrb[0].mxu0
        %730 = vmatprep.mubr.f32.mxu0 0.0
        %v731 = vand.u32 %v242, 4294901760
        %732 = vmatmul.mubr.f32.gmra.mrb[0].mxu0 %v731
        %v733 = vpop.f32.mrb[0].mxu0
        %v734 = vadd.f32 %v656, %v733
        %v735 = vpop.f32.mrb[0].mxu0
        %736 = vdwg.mxu0
        %v737 = vxor.u32 %v728, 2147483648
        %v738 = vxor.u32 %v734, 2147483648
        %v739 = vmul.f32 %v737, 1.442695
        %v740 = vpow.pop %v739
        %v741 = vmul.f32 %v738, 1.442695
        %v742 = vpow.pop %v741
        %v743 = vadd.f32 %v740, 1.0
        %v744 = vadd.f32 %v742, 1.0
        %v745 = vrcp.pop %v743
        %v746 = vmul.f32 1.0, %v745
        %v747 = vrcp.pop %v744
        %v748 = vmul.f32 1.0, %v747
        %750 = vset.pattern.permute.xlu0 0
        %751 = vperm.xlu0 %750, %v226
        %v752 = vpop.permute.xlu0 %751
        %vm754 = vcmask 130048
        %v756 = vsel %vm754, %v225, 0
        %758 = vmatprep.subr.mxu0 0.0
        %v759 = vand.u32 %v746, 4294901760
        %760 = vmatpush1.msra.mxu0 %v759
        %761 = vmatprep.subr.mxu0 0.0
        %v762 = vand.u32 %v748, 4294901760
        %763 = vmatpush1.msra.mxu0 %v762
        %764 = vmatprep.subr.mxu0 0.0
        %765 = vmatpush1.msra.mxu0 0.0
        %766 = vmatprep.subr.mxu0 0.0
        %767 = vmatpush1.msra.mxu0 0.0
        %768 = vmatprep.subr.mxu0 0.0
        %769 = vmatpush1.msra.mxu0 0.0
        %770 = vmatprep.subr.mxu0 0.0
        %771 = vmatpush1.msra.mxu0 0.0
        %772 = vmatprep.subr.mxu0 0.0
        %773 = vmatpush1.msra.mxu0 0.0
        %774 = vmatprep.subr.mxu0 0.0
        %775 = vmatpush1.msra.mxu0 0.0
        %776 = vmatprep.subr.mxu0 0.0
        %777 = vmatpush1.msra.mxu0 0.0
        %778 = vmatprep.subr.mxu0 0.0
        %779 = vmatpush1.msra.mxu0 0.0
        %780 = vmatprep.subr.mxu0 0.0
        %781 = vmatpush1.msra.mxu0 0.0
        %782 = vmatprep.subr.mxu0 0.0
        %783 = vmatpush1.msra.mxu0 0.0
        %784 = vmatprep.subr.mxu0 0.0
        %785 = vmatpush1.msra.mxu0 0.0
        %786 = vmatprep.subr.mxu0 0.0
        %787 = vmatpush1.msra.mxu0 0.0
        %788 = vmatprep.subr.mxu0 0.0
        %789 = vmatpush1.msra.mxu0 0.0
        %790 = vmatprep.subr.mxu0 0.0
        %791 = vmatpush1.msra.mxu0 0.0
        %792 = vmatprep.subr.mxu0 0.0
        %793 = vmatpush1.msra.mxu0 0.0
        %794 = vmatprep.subr.mxu0 0.0
        %795 = vmatpush1.msra.mxu0 0.0
        %796 = vmatprep.subr.mxu0 0.0
        %797 = vmatpush1.msra.mxu0 0.0
        %798 = vmatprep.subr.mxu0 0.0
        %799 = vmatpush1.msra.mxu0 0.0
        %800 = vmatprep.subr.mxu0 0.0
        %801 = vmatpush1.msra.mxu0 0.0
        %802 = vmatprep.subr.mxu0 0.0
        %803 = vmatpush1.msra.mxu0 0.0
        %804 = vmatprep.subr.mxu0 0.0
        %805 = vmatpush1.msra.mxu0 0.0
        %806 = vmatprep.subr.mxu0 0.0
        %807 = vmatpush1.msra.mxu0 0.0
        %808 = vmatprep.subr.mxu0 0.0
        %809 = vmatpush1.msra.mxu0 0.0
        %810 = vmatprep.subr.mxu0 0.0
        %811 = vmatpush1.msra.mxu0 0.0
        %812 = vmatprep.subr.mxu0 0.0
        %813 = vmatpush1.msra.mxu0 0.0
        %814 = vmatprep.subr.mxu0 0.0
        %815 = vmatpush1.msra.mxu0 0.0
        %816 = vmatprep.subr.mxu0 0.0
        %817 = vmatpush1.msra.mxu0 0.0
        %818 = vmatprep.subr.mxu0 0.0
        %819 = vmatpush1.msra.mxu0 0.0
        %820 = vmatprep.subr.mxu0 0.0
        %821 = vmatpush1.msra.mxu0 0.0
        %822 = vmatprep.subr.mxu0 0.0
        %823 = vmatpush1.msra.mxu0 0.0
        %824 = vmatprep.mubr.f32.mxu0 0.0
        %v825 = vand.u32 %v756, 4294901760
        %v826 = vsub.f32 %v756, %v825
        %v827 = vand.u32 %v826, 4294901760
        %v828 = vsub.f32 %v826, %v827
        %v829 = vand.u32 %v828, 4294901760
        %830 = vmatmul.mubr.f32.gmra.mrb[0].mxu0 %v829
        %v831 = vpop.f32.mrb[0].mxu0
        %v832 = vadd.f32 %v752, %v831
        %v833 = vpop.f32.mrb[0].mxu0
        %834 = vdwg.mxu0
        %835 = vmatprep.subr.mxu0 0.0
        %v836 = vand.u32 %v746, 4294901760
        %v837 = vsub.f32 %v746, %v836
        %v838 = vand.u32 %v837, 4294901760
        %v839 = vsub.f32 %v837, %v838
        %v840 = vand.u32 %v839, 4294901760
        %841 = vmatpush1.msra.mxu0 %v840
        %842 = vmatprep.subr.mxu0 0.0
        %v843 = vand.u32 %v748, 4294901760
        %v844 = vsub.f32 %v748, %v843
        %v845 = vand.u32 %v844, 4294901760
        %v846 = vsub.f32 %v844, %v845
        %v847 = vand.u32 %v846, 4294901760
        %848 = vmatpush1.msra.mxu0 %v847
        %849 = vmatprep.subr.mxu0 0.0
        %850 = vmatpush1.msra.mxu0 0.0
        %851 = vmatprep.subr.mxu0 0.0
        %852 = vmatpush1.msra.mxu0 0.0
        %853 = vmatprep.subr.mxu0 0.0
        %854 = vmatpush1.msra.mxu0 0.0
        %855 = vmatprep.subr.mxu0 0.0
        %856 = vmatpush1.msra.mxu0 0.0
        %857 = vmatprep.subr.mxu0 0.0
        %858 = vmatpush1.msra.mxu0 0.0
        %859 = vmatprep.subr.mxu0 0.0
        %860 = vmatpush1.msra.mxu0 0.0
        %861 = vmatprep.subr.mxu0 0.0
        %862 = vmatpush1.msra.mxu0 0.0
        %863 = vmatprep.subr.mxu0 0.0
        %864 = vmatpush1.msra.mxu0 0.0
        %865 = vmatprep.subr.mxu0 0.0
        %866 = vmatpush1.msra.mxu0 0.0
        %867 = vmatprep.subr.mxu0 0.0
        %868 = vmatpush1.msra.mxu0 0.0
        %869 = vmatprep.subr.mxu0 0.0
        %870 = vmatpush1.msra.mxu0 0.0
        %871 = vmatprep.subr.mxu0 0.0
        %872 = vmatpush1.msra.mxu0 0.0
        %873 = vmatprep.subr.mxu0 0.0
        %874 = vmatpush1.msra.mxu0 0.0
        %875 = vmatprep.subr.mxu0 0.0
        %876 = vmatpush1.msra.mxu0 0.0
        %877 = vmatprep.subr.mxu0 0.0
        %878 = vmatpush1.msra.mxu0 0.0
        %879 = vmatprep.subr.mxu0 0.0
        %880 = vmatpush1.msra.mxu0 0.0
        %881 = vmatprep.subr.mxu0 0.0
        %882 = vmatpush1.msra.mxu0 0.0
        %883 = vmatprep.subr.mxu0 0.0
        %884 = vmatpush1.msra.mxu0 0.0
        %885 = vmatprep.subr.mxu0 0.0
        %886 = vmatpush1.msra.mxu0 0.0
        %887 = vmatprep.subr.mxu0 0.0
        %888 = vmatpush1.msra.mxu0 0.0
        %889 = vmatprep.subr.mxu0 0.0
        %890 = vmatpush1.msra.mxu0 0.0
        %891 = vmatprep.subr.mxu0 0.0
        %892 = vmatpush1.msra.mxu0 0.0
        %893 = vmatprep.subr.mxu0 0.0
        %894 = vmatpush1.msra.mxu0 0.0
        %895 = vmatprep.subr.mxu0 0.0
        %896 = vmatpush1.msra.mxu0 0.0
        %897 = vmatprep.subr.mxu0 0.0
        %898 = vmatpush1.msra.mxu0 0.0
        %899 = vmatprep.subr.mxu0 0.0
        %900 = vmatpush1.msra.mxu0 0.0
        %901 = vmatprep.subr.mxu0 0.0
        %902 = vmatpush1.msra.mxu0 0.0
        %903 = vmatprep.subr.mxu0 0.0
        %904 = vmatpush1.msra.mxu0 0.0
        %905 = vmatprep.subr.mxu0 0.0
        %906 = vmatpush1.msra.mxu0 0.0
        %907 = vmatprep.subr.mxu0 0.0
        %908 = vmatpush1.msra.mxu0 0.0
        %909 = vmatprep.mubr.f32.mxu0 0.0
        %v910 = vand.u32 %v756, 4294901760
        %911 = vmatmul.mubr.f32.gmra.mrb[0].mxu0 %v910
        %v912 = vpop.f32.mrb[0].mxu0
        %v913 = vadd.f32 %v832, %v912
        %v914 = vpop.f32.mrb[0].mxu0
        %915 = vdwg.mxu0
        %916 = vmatprep.subr.mxu0 0.0
        %v917 = vand.u32 %v746, 4294901760
        %v918 = vsub.f32 %v746, %v917
        %919 = vmatpush1.msra.mxu0 %v918
        %920 = vmatprep.subr.mxu0 0.0
        %v921 = vand.u32 %v748, 4294901760
        %v922 = vsub.f32 %v748, %v921
        %923 = vmatpush1.msra.mxu0 %v922
        %924 = vmatprep.subr.mxu0 0.0
        %925 = vmatpush1.msra.mxu0 0.0
        %926 = vmatprep.subr.mxu0 0.0
        %927 = vmatpush1.msra.mxu0 0.0
        %928 = vmatprep.subr.mxu0 0.0
        %929 = vmatpush1.msra.mxu0 0.0
        %930 = vmatprep.subr.mxu0 0.0
        %931 = vmatpush1.msra.mxu0 0.0
        %932 = vmatprep.subr.mxu0 0.0
        %933 = vmatpush1.msra.mxu0 0.0
        %934 = vmatprep.subr.mxu0 0.0
        %935 = vmatpush1.msra.mxu0 0.0
        %936 = vmatprep.subr.mxu0 0.0
        %937 = vmatpush1.msra.mxu0 0.0
        %938 = vmatprep.subr.mxu0 0.0
        %939 = vmatpush1.msra.mxu0 0.0
        %940 = vmatprep.subr.mxu0 0.0
        %941 = vmatpush1.msra.mxu0 0.0
        %942 = vmatprep.subr.mxu0 0.0
        %943 = vmatpush1.msra.mxu0 0.0
        %944 = vmatprep.subr.mxu0 0.0
        %945 = vmatpush1.msra.mxu0 0.0
        %946 = vmatprep.subr.mxu0 0.0
        %947 = vmatpush1.msra.mxu0 0.0
        %948 = vmatprep.subr.mxu0 0.0
        %949 = vmatpush1.msra.mxu0 0.0
        %950 = vmatprep.subr.mxu0 0.0
        %951 = vmatpush1.msra.mxu0 0.0
        %952 = vmatprep.subr.mxu0 0.0
        %953 = vmatpush1.msra.mxu0 0.0
        %954 = vmatprep.subr.mxu0 0.0
        %955 = vmatpush1.msra.mxu0 0.0
        %956 = vmatprep.subr.mxu0 0.0
        %957 = vmatpush1.msra.mxu0 0.0
        %958 = vmatprep.subr.mxu0 0.0
        %959 = vmatpush1.msra.mxu0 0.0
        %960 = vmatprep.subr.mxu0 0.0
        %961 = vmatpush1.msra.mxu0 0.0
        %962 = vmatprep.subr.mxu0 0.0
        %963 = vmatpush1.msra.mxu0 0.0
        %964 = vmatprep.subr.mxu0 0.0
        %965 = vmatpush1.msra.mxu0 0.0
        %966 = vmatprep.subr.mxu0 0.0
        %967 = vmatpush1.msra.mxu0 0.0
        %968 = vmatprep.subr.mxu0 0.0
        %969 = vmatpush1.msra.mxu0 0.0
        %970 = vmatprep.subr.mxu0 0.0
        %971 = vmatpush1.msra.mxu0 0.0
        %972 = vmatprep.subr.mxu0 0.0
        %973 = vmatpush1.msra.mxu0 0.0
        %974 = vmatprep.subr.mxu0 0.0
        %975 = vmatpush1.msra.mxu0 0.0
        %976 = vmatprep.subr.mxu0 0.0
        %977 = vmatpush1.msra.mxu0 0.0
        %978 = vmatprep.subr.mxu0 0.0
        %979 = vmatpush1.msra.mxu0 0.0
        %980 = vmatprep.subr.mxu0 0.0
        %981 = vmatpush1.msra.mxu0 0.0
        %982 = vmatprep.subr.mxu0 0.0
        %983 = vmatpush1.msra.mxu0 0.0
        %984 = vmatprep.mubr.f32.mxu0 0.0
        %v985 = vand.u32 %v756, 4294901760
        %v986 = vsub.f32 %v756, %v985
        %987 = vmatmul.mubr.f32.gmra.mrb[0].mxu0 %v986
        %v988 = vpop.f32.mrb[0].mxu0
        %v989 = vadd.f32 %v913, %v988
        %v990 = vpop.f32.mrb[0].mxu0
        %991 = vdwg.mxu0
        %992 = vmatprep.subr.mxu0 0.0
        %v993 = vand.u32 %v746, 4294901760
        %994 = vmatpush1.msra.mxu0 %v993
        %995 = vmatprep.subr.mxu0 0.0
        %v996 = vand.u32 %v748, 4294901760
        %997 = vmatpush1.msra.mxu0 %v996
        %998 = vmatprep.subr.mxu0 0.0
        %999 = vmatpush1.msra.mxu0 0.0
        %1000 = vmatprep.subr.mxu0 0.0
        %1001 = vmatpush1.msra.mxu0 0.0
        %1002 = vmatprep.subr.mxu0 0.0
        %1003 = vmatpush1.msra.mxu0 0.0
        %1004 = vmatprep.subr.mxu0 0.0
        %1005 = vmatpush1.msra.mxu0 0.0
        %1006 = vmatprep.subr.mxu0 0.0
        %1007 = vmatpush1.msra.mxu0 0.0
        %1008 = vmatprep.subr.mxu0 0.0
        %1009 = vmatpush1.msra.mxu0 0.0
        %1010 = vmatprep.subr.mxu0 0.0
        %1011 = vmatpush1.msra.mxu0 0.0
        %1012 = vmatprep.subr.mxu0 0.0
        %1013 = vmatpush1.msra.mxu0 0.0
        %1014 = vmatprep.subr.mxu0 0.0
        %1015 = vmatpush1.msra.mxu0 0.0
        %1016 = vmatprep.subr.mxu0 0.0
        %1017 = vmatpush1.msra.mxu0 0.0
        %1018 = vmatprep.subr.mxu0 0.0
        %1019 = vmatpush1.msra.mxu0 0.0
        %1020 = vmatprep.subr.mxu0 0.0
        %1021 = vmatpush1.msra.mxu0 0.0
        %1022 = vmatprep.subr.mxu0 0.0
        %1023 = vmatpush1.msra.mxu0 0.0
        %1024 = vmatprep.subr.mxu0 0.0
        %1025 = vmatpush1.msra.mxu0 0.0
        %1026 = vmatprep.subr.mxu0 0.0
        %1027 = vmatpush1.msra.mxu0 0.0
        %1028 = vmatprep.subr.mxu0 0.0
        %1029 = vmatpush1.msra.mxu0 0.0
        %1030 = vmatprep.subr.mxu0 0.0
        %1031 = vmatpush1.msra.mxu0 0.0
        %1032 = vmatprep.subr.mxu0 0.0
        %1033 = vmatpush1.msra.mxu0 0.0
        %1034 = vmatprep.subr.mxu0 0.0
        %1035 = vmatpush1.msra.mxu0 0.0
        %1036 = vmatprep.subr.mxu0 0.0
        %1037 = vmatpush1.msra.mxu0 0.0
        %1038 = vmatprep.subr.mxu0 0.0
        %1039 = vmatpush1.msra.mxu0 0.0
        %1040 = vmatprep.subr.mxu0 0.0
        %1041 = vmatpush1.msra.mxu0 0.0
        %1042 = vmatprep.subr.mxu0 0.0
        %1043 = vmatpush1.msra.mxu0 0.0
        %1044 = vmatprep.subr.mxu0 0.0
        %1045 = vmatpush1.msra.mxu0 0.0
        %1046 = vmatprep.subr.mxu0 0.0
        %1047 = vmatpush1.msra.mxu0 0.0
        %1048 = vmatprep.subr.mxu0 0.0
        %1049 = vmatpush1.msra.mxu0 0.0
        %1050 = vmatprep.subr.mxu0 0.0
        %1051 = vmatpush1.msra.mxu0 0.0
        %1052 = vmatprep.subr.mxu0 0.0
        %1053 = vmatpush1.msra.mxu0 0.0
        %1054 = vmatprep.subr.mxu0 0.0
        %1055 = vmatpush1.msra.mxu0 0.0
        %1056 = vmatprep.subr.mxu0 0.0
        %1057 = vmatpush1.msra.mxu0 0.0
        %1058 = vmatprep.mubr.f32.mxu0 0.0
        %v1059 = vand.u32 %v756, 4294901760
        %v1060 = vsub.f32 %v756, %v1059
        %v1061 = vand.u32 %v1060, 4294901760
        %1062 = vmatmul.mubr.f32.gmra.mrb[0].mxu0 %v1061
        %v1063 = vpop.f32.mrb[0].mxu0
        %v1064 = vadd.f32 %v989, %v1063
        %v1065 = vpop.f32.mrb[0].mxu0
        %1066 = vdwg.mxu0
        %1067 = vmatprep.subr.mxu0 0.0
        %v1068 = vand.u32 %v746, 4294901760
        %v1069 = vsub.f32 %v746, %v1068
        %v1070 = vand.u32 %v1069, 4294901760
        %1071 = vmatpush1.msra.mxu0 %v1070
        %1072 = vmatprep.subr.mxu0 0.0
        %v1073 = vand.u32 %v748, 4294901760
        %v1074 = vsub.f32 %v748, %v1073
        %v1075 = vand.u32 %v1074, 4294901760
        %1076 = vmatpush1.msra.mxu0 %v1075
        %1077 = vmatprep.subr.mxu0 0.0
        %1078 = vmatpush1.msra.mxu0 0.0
        %1079 = vmatprep.subr.mxu0 0.0
        %1080 = vmatpush1.msra.mxu0 0.0
        %1081 = vmatprep.subr.mxu0 0.0
        %1082 = vmatpush1.msra.mxu0 0.0
        %1083 = vmatprep.subr.mxu0 0.0
        %1084 = vmatpush1.msra.mxu0 0.0
        %1085 = vmatprep.subr.mxu0 0.0
        %1086 = vmatpush1.msra.mxu0 0.0
        %1087 = vmatprep.subr.mxu0 0.0
        %1088 = vmatpush1.msra.mxu0 0.0
        %1089 = vmatprep.subr.mxu0 0.0
        %1090 = vmatpush1.msra.mxu0 0.0
        %1091 = vmatprep.subr.mxu0 0.0
        %1092 = vmatpush1.msra.mxu0 0.0
        %1093 = vmatprep.subr.mxu0 0.0
        %1094 = vmatpush1.msra.mxu0 0.0
        %1095 = vmatprep.subr.mxu0 0.0
        %1096 = vmatpush1.msra.mxu0 0.0
        %1097 = vmatprep.subr.mxu0 0.0
        %1098 = vmatpush1.msra.mxu0 0.0
        %1099 = vmatprep.subr.mxu0 0.0
        %1100 = vmatpush1.msra.mxu0 0.0
        %1101 = vmatprep.subr.mxu0 0.0
        %1102 = vmatpush1.msra.mxu0 0.0
        %1103 = vmatprep.subr.mxu0 0.0
        %1104 = vmatpush1.msra.mxu0 0.0
        %1105 = vmatprep.subr.mxu0 0.0
        %1106 = vmatpush1.msra.mxu0 0.0
        %1107 = vmatprep.subr.mxu0 0.0
        %1108 = vmatpush1.msra.mxu0 0.0
        %1109 = vmatprep.subr.mxu0 0.0
        %1110 = vmatpush1.msra.mxu0 0.0
        %1111 = vmatprep.subr.mxu0 0.0
        %1112 = vmatpush1.msra.mxu0 0.0
        %1113 = vmatprep.subr.mxu0 0.0
        %1114 = vmatpush1.msra.mxu0 0.0
        %1115 = vmatprep.subr.mxu0 0.0
        %1116 = vmatpush1.msra.mxu0 0.0
        %1117 = vmatprep.subr.mxu0 0.0
        %1118 = vmatpush1.msra.mxu0 0.0
        %1119 = vmatprep.subr.mxu0 0.0
        %1120 = vmatpush1.msra.mxu0 0.0
        %1121 = vmatprep.subr.mxu0 0.0
        %1122 = vmatpush1.msra.mxu0 0.0
        %1123 = vmatprep.subr.mxu0 0.0
        %1124 = vmatpush1.msra.mxu0 0.0
        %1125 = vmatprep.subr.mxu0 0.0
        %1126 = vmatpush1.msra.mxu0 0.0
        %1127 = vmatprep.subr.mxu0 0.0
        %1128 = vmatpush1.msra.mxu0 0.0
        %1129 = vmatprep.subr.mxu0 0.0
        %1130 = vmatpush1.msra.mxu0 0.0
        %1131 = vmatprep.subr.mxu0 0.0
        %1132 = vmatpush1.msra.mxu0 0.0
        %1133 = vmatprep.subr.mxu0 0.0
        %1134 = vmatpush1.msra.mxu0 0.0
        %1135 = vmatprep.subr.mxu0 0.0
        %1136 = vmatpush1.msra.mxu0 0.0
        %1137 = vmatprep.mubr.f32.mxu0 0.0
        %v1138 = vand.u32 %v756, 4294901760
        %1139 = vmatmul.mubr.f32.gmra.mrb[0].mxu0 %v1138
        %v1140 = vpop.f32.mrb[0].mxu0
        %v1141 = vadd.f32 %v1064, %v1140
        %v1142 = vpop.f32.mrb[0].mxu0
        %1143 = vdwg.mxu0
        %1144 = vmatprep.subr.mxu0 0.0
        %v1145 = vand.u32 %v746, 4294901760
        %1146 = vmatpush1.msra.mxu0 %v1145
        %1147 = vmatprep.subr.mxu0 0.0
        %v1148 = vand.u32 %v748, 4294901760
        %1149 = vmatpush1.msra.mxu0 %v1148
        %1150 = vmatprep.subr.mxu0 0.0
        %1151 = vmatpush1.msra.mxu0 0.0
        %1152 = vmatprep.subr.mxu0 0.0
        %1153 = vmatpush1.msra.mxu0 0.0
        %1154 = vmatprep.subr.mxu0 0.0
        %1155 = vmatpush1.msra.mxu0 0.0
        %1156 = vmatprep.subr.mxu0 0.0
        %1157 = vmatpush1.msra.mxu0 0.0
        %1158 = vmatprep.subr.mxu0 0.0
        %1159 = vmatpush1.msra.mxu0 0.0
        %1160 = vmatprep.subr.mxu0 0.0
        %1161 = vmatpush1.msra.mxu0 0.0
        %1162 = vmatprep.subr.mxu0 0.0
        %1163 = vmatpush1.msra.mxu0 0.0
        %1164 = vmatprep.subr.mxu0 0.0
        %1165 = vmatpush1.msra.mxu0 0.0
        %1166 = vmatprep.subr.mxu0 0.0
        %1167 = vmatpush1.msra.mxu0 0.0
        %1168 = vmatprep.subr.mxu0 0.0
        %1169 = vmatpush1.msra.mxu0 0.0
        %1170 = vmatprep.subr.mxu0 0.0
        %1171 = vmatpush1.msra.mxu0 0.0
        %1172 = vmatprep.subr.mxu0 0.0
        %1173 = vmatpush1.msra.mxu0 0.0
        %1174 = vmatprep.subr.mxu0 0.0
        %1175 = vmatpush1.msra.mxu0 0.0
        %1176 = vmatprep.subr.mxu0 0.0
        %1177 = vmatpush1.msra.mxu0 0.0
        %1178 = vmatprep.subr.mxu0 0.0
        %1179 = vmatpush1.msra.mxu0 0.0
        %1180 = vmatprep.subr.mxu0 0.0
        %1181 = vmatpush1.msra.mxu0 0.0
        %1182 = vmatprep.subr.mxu0 0.0
        %1183 = vmatpush1.msra.mxu0 0.0
        %1184 = vmatprep.subr.mxu0 0.0
        %1185 = vmatpush1.msra.mxu0 0.0
        %1186 = vmatprep.subr.mxu0 0.0
        %1187 = vmatpush1.msra.mxu0 0.0
        %1188 = vmatprep.subr.mxu0 0.0
        %1189 = vmatpush1.msra.mxu0 0.0
        %1190 = vmatprep.subr.mxu0 0.0
        %1191 = vmatpush1.msra.mxu0 0.0
        %1192 = vmatprep.subr.mxu0 0.0
        %1193 = vmatpush1.msra.mxu0 0.0
        %1194 = vmatprep.subr.mxu0 0.0
        %1195 = vmatpush1.msra.mxu0 0.0
        %1196 = vmatprep.subr.mxu0 0.0
        %1197 = vmatpush1.msra.mxu0 0.0
        %1198 = vmatprep.subr.mxu0 0.0
        %1199 = vmatpush1.msra.mxu0 0.0
        %1200 = vmatprep.subr.mxu0 0.0
        %1201 = vmatpush1.msra.mxu0 0.0
        %1202 = vmatprep.subr.mxu0 0.0
        %1203 = vmatpush1.msra.mxu0 0.0
        %1204 = vmatprep.subr.mxu0 0.0
        %1205 = vmatpush1.msra.mxu0 0.0
        %1206 = vmatprep.subr.mxu0 0.0
        %1207 = vmatpush1.msra.mxu0 0.0
        %1208 = vmatprep.subr.mxu0 0.0
        %1209 = vmatpush1.msra.mxu0 0.0
        %1210 = vmatprep.mubr.f32.mxu0 0.0
        %v1211 = vand.u32 %v756, 4294901760
        %1212 = vmatmul.mubr.f32.gmra.mrb[0].mxu0 %v1211
        %v1213 = vpop.f32.mrb[0].mxu0
        %v1214 = vadd.f32 %v1141, %v1213
        %v1215 = vpop.f32.mrb[0].mxu0
        %1216 = vdwg.mxu0
        %vm1217 = vcmask 1042432
        %v1218 = vsel %vm1217, %v1214, -inf
        %v1219 = vrot.slane %v1218, 4
        %v1220 = vmax.f32 %v1218, %v1219
        %v1221 = vrot.slane %v1220, 2
        %v1222 = vmax.f32 %v1220, %v1221
        %v1223 = vrot.slane %v1222, 1
        %v1224 = vmax.f32 %v1222, %v1223
        %v1225 = vsub.f32 %v1214, %v1224
        %v1226 = vmul.f32 %v1225, 1.442695
        %v1227 = vpow.pop %v1226
        %v1228 = vsel %vm1217, %v1227, 0.0
        %v1229 = vrot.slane %v1228, 4
        %v1230 = vadd.f32 %v1228, %v1229
        %v1231 = vrot.slane %v1230, 2
        %v1232 = vadd.f32 %v1230, %v1231
        %v1233 = vrot.slane %v1232, 1
        %v1234 = vadd.f32 %v1232, %v1233
        %v1235 = vlog2.pop %v1234
        %v1236 = vmul.f32 %v1235, 0.6931472
        %v1237 = vsub.f32 %v1225, %v1236
        %1238 = vst [vmem:[%s215] sm:$0x7] %v1237
        %s1239 = sand.u32 %s137, 1
        %s1240 = scalar_lea.sflag [#allocation3], %s1239
        %s1241 = sand.u32 %s137, 1
        %s1242 = smul.addr %s1241, 4
        %s1243 = scalar_lea.vmem [#allocation2], %s1242
        // Predicated region
        $region41: #{tpu_custom_call.1} parent=39 // pred_check
          %p1244 = pneg %p147
        $region42: #{tpu_custom_call.1} parent=39 // pred_check_branch
          %1246 = sbr.rel (%p1244) target = $region44
        $region43: #{tpu_custom_call.1} parent=39 // pred_region
          %s1248 = ssub.s32 64, 64
          %1249 = vsyncadd %s1240, %s1248
          %s1250 = smul.addr %s19, 64
          %s1251 = scalar_lea.hbm %s5, %s1250
          %s1253 = sshll.u32 %s1243, 4
          %s1254 = int_to_ptr.vmem [resolvable:$true] %s1253
          %1256 = dma.vmem_to_hbm [thread:$0]  %s1254, 64, %s1251, %s1240
        $region44: #{tpu_custom_call.1} parent=39 // pred_fallthru
          _
      $region40: #{tpu_custom_call.1} parent=5 // pred_fallthru
        _
      %p1257 = scmp.le.s32.totalorder 2, %s14
      // Predicated region
      $region45: #{tpu_custom_call.1} parent=5 // pred_check
        %p1258 = pneg %p1257
      $region46: #{tpu_custom_call.1} parent=5 // pred_check_branch
        %1260 = sbr.rel (%p1258) target = $region48
      $region47: #{tpu_custom_call.1} parent=5 // pred_region
        %s1261 = ssub.s32 %s14, 2
        // Predicated region
        $region49: #{tpu_custom_call.1} parent=47 // pred_check
          %p1262 = pneg %p153
        $region50: #{tpu_custom_call.1} parent=47 // pred_check_branch
          %1264 = sbr.rel (%p1262) target = $region52
        $region51: #{tpu_custom_call.1} parent=47 // pred_region
          %s1265 = sand.u32 %s138, 1
          %s1266 = scalar_lea.sflag [#allocation3], %s1265
          %s1267 = sand.u32 %s138, 1
          %s1268 = smul.addr %s1267, 4
          %s1269 = scalar_lea.vmem [#allocation2], %s1268
          %1270 = dma.done %s1266, 64
        $region52: #{tpu_custom_call.1} parent=47 // pred_fallthru
          _
      $region48: #{tpu_custom_call.1} parent=5 // pred_fallthru
        _
    $region6: #{tpu_custom_call.1} parent=1 // loop_footer
      %s18 = sadd.s32 1, %s14
    $region7: #{tpu_custom_call.1} parent=1 // loop_footer_branch
      %13 = sbr.rel target = $region3
    $region8: #{tpu_custom_call.1} parent=1 // loop_exit
      _
    %1271 = vsyncpa [#allocation3], 1
    %s1272 = scalar_lea.sflag [#allocation3], 1
    %1273 = vsyncpa %s1272, 1

</llo_original>
